<compile_context>
chip_gen: v6e
topology: v6e:2x2x1
jax: 0.10.0
libtpu: 0.0.40
codegen_flags: <defaults>
</compile_context>

<pallas_src>
import functools
import math

import numpy as np
import jax
import jax.numpy as jnp
from jax.experimental import pallas as pl
from jax.experimental.pallas import tpu as pltpu

LANE = 128
_MIB = 1 << 20


def _conv_kernel(x_ref, w_ref, b_ref, o_ref, *, k, stride, tile_h,
                 activate, negative_slope, scale, resident):
    # x_ref: resident path -> (1, Hfull, W_out, k*C_in)   (full width-gathered image)
    #        blocked path  -> (1, 1, in_h, W_out, k*C_in) (halo slab for this h-block)
    # w_ref: (k*k*C_in, Cp)   contraction order (kh, kw, cin); Cp = round_up(C_out, 128)
    # b_ref: (1, Cp)          f32 bias (conv bias or FusedLeakyReLU bias), zero-padded
    # o_ref: (1, M, Cp)       flat output rows for this (n, h-block), M = tile_h * W_out
    _, M, Cp = o_ref.shape
    kC = x_ref.shape[-1]
    KK = k * kC

    # Gather the k kh-taps (kw already folded into channels by the wrapper) and
    # concatenate them on the contraction axis -> one big MXU dot.
    taps = []
    for kh in range(k):
        if resident:
            start = pl.program_id(1) * (tile_h * stride) + kh
            if stride == 1:
                win = x_ref[0, pl.ds(start, tile_h), :, :]
            else:
                win = x_ref[0, pl.ds(start, tile_h, stride), :, :]
        else:
            if stride == 1:
                win = x_ref[0, 0, kh:kh + tile_h, :, :]
            else:
                win = x_ref[0, 0, pl.ds(kh, tile_h, stride), :, :]
        taps.append(win)                                     # (tile_h, W_out, kC)

    lhs = taps[0] if k == 1 else jnp.concatenate(taps, axis=-1)   # (tile_h, W_out, k*kC)
    lhs = lhs.reshape(M, KK)

    acc = jnp.dot(lhs, w_ref[...], preferred_element_type=jnp.float32)   # (M, Cp)
    acc = acc + b_ref[...].astype(jnp.float32)
    if activate:
        acc = jnp.where(acc >= 0.0, acc, acc * negative_slope)
        if scale != 1.0:                                     # static: skip vmul when scale == 1
            acc = acc * scale

    o_ref[0] = acc.astype(o_ref.dtype)


def _round_up(v, m):
    return ((v + m - 1) // m) * m


def _slab_footprint(t, W_out, kC, KK, Cp, in_bytes, out_bytes, stride, k):
    """Estimated per-grid-step VMEM footprint when the input is halo-slab blocked."""
    in_h = stride * (t - 1) + k
    M = t * W_out
    return (2 * in_h * W_out * kC * in_bytes     # input slab (double-buffered)
            + 2 * M * Cp * out_bytes             # output block (double-buffered)
            + 2 * KK * Cp * in_bytes             # weights (2 pipeline buffers)
            + M * KK * in_bytes                  # im2col lhs value
            + M * Cp * 4)                        # f32 accumulator value


def _pick_tile_h(H_out, W_out, kC, KK, Cp, in_bytes, out_bytes, stride, k, budget):
    # M = tile_h * W_out must be a multiple of 8 for an unmasked (sublane-dense) store.
    step = 8 // math.gcd(W_out, 8)
    cap = max(step, _round_up(H_out, step))
    tile_h = step
    t = step
    while t <= cap and _slab_footprint(t, W_out, kC, KK, Cp, in_bytes, out_bytes,
                                       stride, k) <= budget:
        tile_h = t
        t += step
    return tile_h


def volume_render_disc_conv2d(x, weight, bias=None, *, stride=1, padding=0,
                              activate=False, negative_slope=0.2, scale=1.0,
                              compute_dtype=jnp.bfloat16, out_dtype=jnp.float32,
                              nhwc_input=False, nhwc_output=False,
                              block_input=None, vmem_budget_bytes=24 * _MIB):
    """Forward pass of VolumeRenderDiscConv2d.

    x:      (N, C_in, H, W) (NCHW, matching the PyTorch module) or NHWC if nhwc_input=True.
    weight: (C_out, C_in, k, k)
    bias:   (C_out,) or None.  If activate=True this is the FusedLeakyReLU bias (the conv
            itself is bias-free, matching the module); otherwise it is the conv bias.
    Returns (N, C_out, H_out, W_out) (or NHWC if nhwc_output=True), dtype = out_dtype.
    """
    if nhwc_input:
        N, H, W, C_in = x.shape
        x_nhwc = x
    else:
        N, C_in, H, W = x.shape
        x_nhwc = jnp.transpose(x, (0, 2, 3, 1))
    C_out, C_in_w, kh_, kw_ = weight.shape
    assert C_in == C_in_w and kh_ == kw_
    k = kh_

    Hp, Wp = H + 2 * padding, W + 2 * padding
    H_out = (Hp - k) // stride + 1
    W_out = (Wp - k) // stride + 1
    assert H_out > 0 and W_out > 0

    kC = k * C_in                       # channels after width-only im2col
    KK = k * kC                         # full contraction dim (kh, kw, cin)
    Cp = _round_up(C_out, LANE)         # lane-dense output channels

    in_bytes = jnp.dtype(compute_dtype).itemsize
    out_bytes = jnp.dtype(out_dtype).itemsize

    tile_h = _pick_tile_h(H_out, W_out, kC, KK, Cp, in_bytes, out_bytes, stride, k,
                          vmem_budget_bytes)
    n_hblk = -(-H_out // tile_h)
    H_out_pad = n_hblk * tile_h
    in_h = stride * (tile_h - 1) + k
    M = tile_h * W_out
    Hp_need = (H_out_pad - 1) * stride + k          # input rows the kernel may touch

    # Layout pass: NCHW -> NHWC, spatial zero-pad (+ tail rows so every halo slab is
    # in-bounds), then width-only im2col: gather the k kw-taps into the channel axis.
    pad_h_hi = padding + max(0, Hp_need - Hp)
    x_pad = jnp.pad(x_nhwc.astype(compute_dtype),
                    ((0, 0), (padding, pad_h_hi), (padding, padding), (0, 0)))
    Hfull = H + padding + pad_h_hi
    cols = [x_pad[:, :, kw: kw + stride * (W_out - 1) + 1: stride, :] for kw in range(k)]
    x_w = cols[0] if k == 1 else jnp.concatenate(cols, axis=-1)   # (N, Hfull, W_out, kC)

    # Input residency: keep the whole width-gathered image in VMEM when it fits the
    # budget (no extra HBM pass); otherwise pre-slice per-grid halo slabs (scales to any H).
    slab_foot = _slab_footprint(tile_h, W_out, kC, KK, Cp, in_bytes, out_bytes, stride, k)
    resident_foot = slab_foot - 2 * in_h * W_out * kC * in_bytes \
        + 2 * Hfull * W_out * kC * in_bytes
    if block_input is None:
        resident = resident_foot <= vmem_budget_bytes
    else:
        resident = not block_input

    if resident:
        x_in = x_w
        x_spec = pl.BlockSpec((1, Hfull, W_out, kC), lambda n, hb: (n, 0, 0, 0))
        kernel_foot = resident_foot
    else:
        row0 = jnp.arange(n_hblk, dtype=jnp.int32) * (tile_h * stride)
        rows = row0[:, None] + jnp.arange(in_h, dtype=jnp.int32)[None, :]
        x_in = x_w[:, rows]                                   # (N, n_hblk, in_h, W_out, kC)
        x_spec = pl.BlockSpec((1, 1, in_h, W_out, kC), lambda n, hb: (n, hb, 0, 0, 0))
        kernel_foot = slab_foot

    vmem_cap = 56 * _MIB                                      # stay under v7x's 64 MiB/TC
    if kernel_foot > vmem_cap:
        raise ValueError(
            f"VolumeRenderDiscConv2d Pallas kernel needs ~{kernel_foot / _MIB:.1f} MiB of "
            f"VMEM even at the minimum tile (W_out={W_out}, Cp={Cp}); shape too large for "
            f"this tiling scheme.")
    vmem_limit = int(min(vmem_cap, max(32 * _MIB, kernel_foot + 8 * _MIB)))

    # Weights (C_out, C_in, kh, kw) -> (k*k*C_in, Cp), contraction order (kh, kw, cin),
    # output channels zero-padded to a multiple of 128 (lane-dense).
    w_mat = jnp.transpose(weight, (2, 3, 1, 0)).reshape(KK, C_out)
    w_mat = jnp.pad(w_mat, ((0, 0), (0, Cp - C_out))).astype(compute_dtype)

    if bias is None:
        bias = jnp.zeros((C_out,), jnp.float32)
    b2d = jnp.pad(bias.astype(jnp.float32).reshape(1, C_out), ((0, 0), (0, Cp - C_out)))

    kernel = functools.partial(
        _conv_kernel, k=k, stride=stride, tile_h=tile_h, activate=activate,
        negative_slope=float(negative_slope), scale=float(scale), resident=resident)

    flops = 2 * N * H_out * W_out * KK * C_out
    bytes_accessed = int(x_in.size * in_bytes + w_mat.size * in_bytes + b2d.size * 4
                         + N * H_out_pad * W_out * Cp * out_bytes)

    out = pl.pallas_call(
        kernel,
        out_shape=jax.ShapeDtypeStruct((N, H_out_pad * W_out, Cp), out_dtype),
        grid=(N, n_hblk),
        in_specs=[
            x_spec,
            pl.BlockSpec((KK, Cp), lambda n, hb: (0, 0)),
            pl.BlockSpec((1, Cp), lambda n, hb: (0, 0)),
        ],
        out_specs=pl.BlockSpec((1, M, Cp), lambda n, hb: (n, hb, 0)),
        compiler_params=pltpu.CompilerParams(
            dimension_semantics=("parallel", "parallel"),
            vmem_limit_bytes=vmem_limit),
        cost_estimate=pl.CostEstimate(flops=int(flops), transcendentals=0,
                                      bytes_accessed=bytes_accessed),
    )(x_in, w_mat, b2d)

    # Drop the padded tail rows / channels, then restore the spatial layout.
    out = out[:, :H_out * W_out, :C_out].reshape(N, H_out, W_out, C_out)
    if nhwc_output:
        return out
    return jnp.transpose(out, (0, 3, 1, 2))                   # NHWC -> NCHW (module contract)


def _reference(x, weight, bias, *, stride, padding, activate,
               negative_slope=0.2, scale=1.0):
    """Pure-JAX reference (lax conv) for correctness checking."""
    out = jax.lax.conv_general_dilated(
        x, weight, window_strides=(stride, stride),
        padding=[(padding, padding), (padding, padding)],
        dimension_numbers=("NCHW", "OIHW", "NCHW"))
    if bias is not None:
        out = out + bias.reshape(1, -1, 1, 1)
    if activate:
        out = jnp.where(out >= 0.0, out, out * negative_slope) * scale
    return out


if __name__ == "__main__":
    # Small shapes consistent with the module: N=2, C_in=4, 16x16 spatial, C_out=8,
    # 3x3 kernel, stride=1, padding=1, activate=True (FusedLeakyReLU, scale=1).
    N, C_in, H, W = 2, 4, 16, 16
    C_out, ksize, stride, padding = 8, 3, 1, 1
    activate = True

    key = jax.random.PRNGKey(0)
    k1, k2, k3 = jax.random.split(key, 3)

    fan_in = C_in * ksize * ksize
    w_bound = 1.0 / np.sqrt(fan_in)
    weight = jax.random.uniform(k1, (C_out, C_in, ksize, ksize),
                                minval=-w_bound, maxval=w_bound, dtype=jnp.float32)
    bias_init_coef = float(np.sqrt(1.0 / fan_in))
    act_bias = jax.random.uniform(k2, (C_out,), minval=-bias_init_coef,
                                  maxval=bias_init_coef, dtype=jnp.float32)
    x = jax.random.normal(k3, (N, C_in, H, W), dtype=jnp.float32)

    ref = _reference(x, weight, act_bias, stride=stride, padding=padding,
                     activate=activate, negative_slope=0.2, scale=1.0)

    # 1) f32 compute, resident input, single h-block — tight check.
    out_f32 = volume_render_disc_conv2d(x, weight, act_bias, stride=stride,
                                        padding=padding, activate=activate,
                                        compute_dtype=jnp.float32)
    out_f32 = jax.block_until_ready(out_f32)
    assert out_f32.shape == (N, C_out, H, W)
    np.testing.assert_allclose(np.asarray(out_f32), np.asarray(ref), rtol=1e-4, atol=1e-4)

    # 2) bf16 MXU path (default, f32 accumulation) — loose check.
    out_bf16 = volume_render_disc_conv2d(x, weight, act_bias, stride=stride,
                                         padding=padding, activate=activate,
                                         compute_dtype=jnp.bfloat16)
    out_bf16 = jax.block_until_ready(out_bf16)
    np.testing.assert_allclose(np.asarray(out_bf16), np.asarray(ref), rtol=3e-2, atol=3e-2)

    # 3) Small VMEM budget -> multiple h-blocks + padded tail rows, resident input
    #    (exercises the dynamic halo slicing inside the kernel).
    out_small = volume_render_disc_conv2d(x, weight, act_bias, stride=stride,
                                          padding=padding, activate=activate,
                                          compute_dtype=jnp.float32,
                                          block_input=False,
                                          vmem_budget_bytes=150_000)
    out_small = jax.block_until_ready(out_small)
    np.testing.assert_allclose(np.asarray(out_small), np.asarray(ref), rtol=1e-4, atol=1e-4)

    # 4) Same small budget with the halo-slab blocked input path (v7x-style blocking).
    out_blk = volume_render_disc_conv2d(x, weight, act_bias, stride=stride,
                                        padding=padding, activate=activate,
                                        compute_dtype=jnp.float32,
                                        block_input=True,
                                        vmem_budget_bytes=150_000)
    out_blk = jax.block_until_ready(out_blk)
    np.testing.assert_allclose(np.asarray(out_blk), np.asarray(ref), rtol=1e-4, atol=1e-4)

    print("KERNEL_OK")
</pallas_src>

<mosaic_0001>
module attributes {stable_mosaic.version = 11 : i64} {
  func.func @_conv_kernel(%arg0: i32, %arg1: i32, %arg2: memref<1x18x16x12xf32, #tpu.memory_space<vmem>>, %arg3: memref<36x128xf32, #tpu.memory_space<vmem>>, %arg4: memref<1x128xf32, #tpu.memory_space<vmem>>, %arg5: memref<1x256x128xf32, #tpu.memory_space<vmem>>) attributes {dimension_semantics = [#tpu.dimension_semantics<parallel>, #tpu.dimension_semantics<parallel>], iteration_bounds = array<i64: 2, 1>, scalar_prefetch = 0 : i64, scratch_operands = 0 : i64, tpu.core_type = #tpu.core_type<tc>, window_params = [{transform_indices = @transform_0, window_bounds = array<i64: 1, 18, 16, 12>}, {pipeline_mode = #tpu.pipeline_mode<synchronous>, transform_indices = @transform_1, window_bounds = array<i64: 36, 128>}, {pipeline_mode = #tpu.pipeline_mode<synchronous>, transform_indices = @transform_2, window_bounds = array<i64: 1, 128>}, {transform_indices = @transform_3, window_bounds = array<i64: 1, 256, 128>}]} {
    %c16_i32 = arith.constant 16 : i32
    %0 = arith.muli %arg1, %c16_i32 : i32
    %c0_i32 = arith.constant 0 : i32
    %1 = arith.addi %0, %c0_i32 : i32
    %c0 = arith.constant 0 : index
    %2 = arith.index_cast %1 : i32 to index
    %c0_0 = arith.constant 0 : index
    %c0_1 = arith.constant 0 : index
    %3 = vector.load %arg2[%c0, %2, %c0_0, %c0_1] : memref<1x18x16x12xf32, #tpu.memory_space<vmem>>, vector<1x16x16x12xf32>
    %4 = vector.shape_cast %3 : vector<1x16x16x12xf32> to vector<16x16x12xf32>
    %c16_i32_2 = arith.constant 16 : i32
    %5 = arith.muli %arg1, %c16_i32_2 : i32
    %c1_i32 = arith.constant 1 : i32
    %6 = arith.addi %5, %c1_i32 : i32
    %c0_3 = arith.constant 0 : index
    %7 = arith.index_cast %6 : i32 to index
    %c0_4 = arith.constant 0 : index
    %c0_5 = arith.constant 0 : index
    %8 = vector.load %arg2[%c0_3, %7, %c0_4, %c0_5] : memref<1x18x16x12xf32, #tpu.memory_space<vmem>>, vector<1x16x16x12xf32>
    %9 = vector.shape_cast %8 : vector<1x16x16x12xf32> to vector<16x16x12xf32>
    %c16_i32_6 = arith.constant 16 : i32
    %10 = arith.muli %arg1, %c16_i32_6 : i32
    %c2_i32 = arith.constant 2 : i32
    %11 = arith.addi %10, %c2_i32 : i32
    %c0_7 = arith.constant 0 : index
    %12 = arith.index_cast %11 : i32 to index
    %c0_8 = arith.constant 0 : index
    %c0_9 = arith.constant 0 : index
    %13 = vector.load %arg2[%c0_7, %12, %c0_8, %c0_9] : memref<1x18x16x12xf32, #tpu.memory_space<vmem>>, vector<1x16x16x12xf32>
    %14 = vector.shape_cast %13 : vector<1x16x16x12xf32> to vector<16x16x12xf32>
    %15 = tpu.concatenate %4, %9, %14 in 2 : vector<16x16x12xf32>, vector<16x16x12xf32>, vector<16x16x12xf32> -> vector<16x16x36xf32>
    %16 = vector.shape_cast %15 : vector<16x16x36xf32> to vector<256x36xf32>
    %c0_10 = arith.constant 0 : index
    %c0_11 = arith.constant 0 : index
    %17 = vector.load %arg3[%c0_10, %c0_11] : memref<36x128xf32, #tpu.memory_space<vmem>>, vector<36x128xf32>
    %cst = arith.constant dense<0.000000e+00> : vector<256x128xf32>
    %18 = tpu.matmul %16, %17, %cst {dimension_numbers = #tpu.dot_dimension_numbers<[1], [0], [0], [1], [0, 0, 1, 1], [], []>} : vector<256x36xf32>, vector<36x128xf32>, vector<256x128xf32> -> vector<256x128xf32>
    %c0_12 = arith.constant 0 : index
    %c0_13 = arith.constant 0 : index
    %19 = vector.load %arg4[%c0_12, %c0_13] : memref<1x128xf32, #tpu.memory_space<vmem>>, vector<1x128xf32>
    %20 = vector.broadcast %19 : vector<1x128xf32> to vector<256x128xf32>
    %21 = arith.addf %18, %20 : vector<256x128xf32>
    %cst_14 = arith.constant 0.000000e+00 : f32
    %22 = vector.broadcast %cst_14 : f32 to vector<256x128xf32>
    %23 = arith.cmpf oge, %21, %22 : vector<256x128xf32>
    %cst_15 = arith.constant 2.000000e-01 : f32
    %24 = vector.broadcast %cst_15 : f32 to vector<256x128xf32>
    %25 = arith.mulf %21, %24 : vector<256x128xf32>
    %26 = arith.select %23, %21, %25 : vector<256x128xi1>, vector<256x128xf32>
    %c0_16 = arith.constant 0 : index
    %c0_17 = arith.constant 0 : index
    %c0_18 = arith.constant 0 : index
    %27 = vector.load %arg5[%c0_16, %c0_17, %c0_18] : memref<1x256x128xf32, #tpu.memory_space<vmem>>, vector<1x256x128xf32>
    %28 = vector.shape_cast %27 : vector<1x256x128xf32> to vector<256x128xf32>
    %29 = vector.shape_cast %26 : vector<256x128xf32> to vector<1x256x128xf32>
    tpu.vector_store %arg5[%c0_16, %c0_17, %c0_18], %29 {strides = array<i32>} : memref<1x256x128xf32, #tpu.memory_space<vmem>>, vector<1x256x128xf32>,
    return
  }
  func.func @transform_0(%arg0: i32, %arg1: i32) -> (i32, i32, i32, i32) {
    %c0_i32 = arith.constant 0 : i32
    %c0_i32_0 = arith.constant 0 : i32
    %c0_i32_1 = arith.constant 0 : i32
    %c0_i32_2 = arith.constant 0 : i32
    return %arg0, %c0_i32, %c0_i32_0, %c0_i32_1 : i32, i32, i32, i32
  }
  func.func @transform_1(%arg0: i32, %arg1: i32) -> (i32, i32) {
    %c0_i32 = arith.constant 0 : i32
    %c0_i32_0 = arith.constant 0 : i32
    %c0_i32_1 = arith.constant 0 : i32
    return %c0_i32, %c0_i32_0 : i32, i32
  }
  func.func @transform_2(%arg0: i32, %arg1: i32) -> (i32, i32) {
    %c0_i32 = arith.constant 0 : i32
    %c0_i32_0 = arith.constant 0 : i32
    %c0_i32_1 = arith.constant 0 : i32
    return %c0_i32, %c0_i32_0 : i32, i32
  }
  func.func @transform_3(%arg0: i32, %arg1: i32) -> (i32, i32, i32) {
    %c0_i32 = arith.constant 0 : i32
    %c0_i32_0 = arith.constant 0 : i32
    return %arg0, %arg1, %c0_i32 : i32, i32, i32
  }
}

</mosaic_0001>

<llo_original>
// kernel: tpu_custom_call.1
$region0: #{tpu_custom_call.1}
  #allocation0 [shape = 'u32[]', space=smem, size = 0x4, offset = 0x4, fixed_abs, tag = 'smem constant byte address 0x4 - core index']
  #allocation1 [shape = 'u32[144,128]{1,0:T(1,128)}', space=vmem, size = 0x12000, scoped, tag = 'internal scratch']
  %s0 = inlined_call_operand.vmem [shape: f32[2,18,16,12], index: 0, kind: input, shape index: {}]
  %s1 = inlined_call_operand.vmem [shape: f32[36,128], index: 1, kind: input, shape index: {}]
  %s2 = inlined_call_operand.vmem [shape: f32[1,128], index: 2, kind: input, shape index: {}]
  %s3 = inlined_call_operand.hbm [shape: f32[2,256,128], index: 3, kind: output, shape index: {}]
  %s4 = sld [smem:[#allocation0]]
  $region45: #{tpu_custom_call.1} parent=0
    _
  %s6 = ssub.s32 1, %s4
  %s7 = scalar_select 0, %s6, %s4
  $region1: #{tpu_custom_call.1} parent=0
    #allocation2 [shape = 'u8[262144]{0}', space=vmem, size = 0x40000, scoped, tag = 'output window, operand 0']
    #allocation3 [shape = 's32[2]{0}', space=sflag, size = 0x8, scoped, tag = 'scoped memory for tpu_custom_call.1']
    %8 = vsyncpa [#allocation3], 0
    %s9 = scalar_lea.sflag [#allocation3], 1
    %10 = vsyncpa %s9, 0
    loop: start=0, step=1, limit=4
    $region2: #{tpu_custom_call.1} parent=1 // loop_pre_header
      _
    $region3: #{tpu_custom_call.1} parent=1 // loop_header
      %s12 = sphi 0, %s16
      %p13 = scmp.ge.s32.totalorder %s12, 4
      %s19 = sphi 0, %s31
      %s20 = sphi 0, %s27
      %s21 = sphi 0, %s19
      %s22 = sphi 0, %s20
      %s23 = sphi 0, %s21
      %s24 = sphi 0, %s22
      %s34 = sphi 0, %s36
      %s37 = sphi 0, %s34
      %s38 = sphi 0, %s37
      %s54 = sphi 0, %s38
      %s58 = sphi 0, %s58
      %s60 = sphi 0, %s58
      %s61 = sphi 0, %s60
      %s75 = sphi 0, %s61
      %s79 = sphi 0, %s79
      %s81 = sphi 0, %s79
      %s82 = sphi 0, %s81
      %s96 = sphi 0, %s82
      %s104 = sphi 0, %s106
      %s107 = sphi 0, %s104
      %s108 = sphi 0, %s107
      %s124 = sphi 0, %s108
    $region4: #{tpu_custom_call.1} parent=1 // loop_header_branch
      %15 = sbr.rel (%p13) target = $region8
    $region5: #{tpu_custom_call.1} parent=1 // loop_body
      %s17 = ssub.s32 %s12, 1
      %s18 = ssub.s32 %s12, 2
      %s25 = sadd.s32 1, %s20
      %p26 = scmp.ge.s32.totalorder %s25, 1
      %s27 = scalar_select %p26, 0, %s25
      %s28 = sadd.s32 1, %s19
      %s29 = scalar_select %p26, %s28, %s19
      %p30 = scmp.ge.s32.totalorder %s29, 2
      %s31 = scalar_select %p30, 0, %s29
      %s32 = ssub.s32 %s19, %s31
      %p33 = scmp.eq.s32.totalorder %s32, 0
      %s35 = sadd.s32 %s34, 1
      %s36 = scalar_select %p33, %s34, %s35
      %p39 = pneg %p33
      %p40 = scmp.eq.s32.totalorder %s12, 1
      %p41 = por %p39, %p40
      %p42 = scmp.ne.s32.totalorder %s34, %s37
      %p43 = scmp.eq.s32.totalorder %s12, 0
      %p44 = por %p42, %p43
      %p45 = scmp.ne.s32.totalorder %s34, %s37
      %p46 = scmp.eq.s32.totalorder %s17, 1
      %p47 = por %p45, %p46
      %p48 = scmp.ne.s32.totalorder %s37, %s38
      %p49 = scmp.eq.s32.totalorder %s17, 0
      %p50 = por %p48, %p49
      %p51 = scmp.ne.s32.totalorder %s37, %s38
      %p52 = scmp.eq.s32.totalorder %s18, 1
      %p53 = por %p51, %p52
      %p55 = scmp.ne.s32.totalorder %s38, %s54
      %p56 = scmp.eq.s32.totalorder %s18, 0
      %p57 = por %p55, %p56
      %s59 = sadd.s32 %s58, 1
      %p62 = scmp.eq.s32.totalorder %s12, 1
      %p63 = scmp.ne.s32.totalorder %s58, %s60
      %p64 = scmp.eq.s32.totalorder %s12, 0
      %p65 = por %p63, %p64
      %p66 = scmp.ne.s32.totalorder %s58, %s60
      %p67 = scmp.eq.s32.totalorder %s17, 1
      %p68 = por %p66, %p67
      %p69 = scmp.ne.s32.totalorder %s60, %s61
      %p70 = scmp.eq.s32.totalorder %s17, 0
      %p71 = por %p69, %p70
      %p72 = scmp.ne.s32.totalorder %s60, %s61
      %p73 = scmp.eq.s32.totalorder %s18, 1
      %p74 = por %p72, %p73
      %p76 = scmp.ne.s32.totalorder %s61, %s75
      %p77 = scmp.eq.s32.totalorder %s18, 0
      %p78 = por %p76, %p77
      %s80 = sadd.s32 %s79, 1
      %p83 = scmp.eq.s32.totalorder %s12, 1
      %p84 = scmp.ne.s32.totalorder %s79, %s81
      %p85 = scmp.eq.s32.totalorder %s12, 0
      %p86 = por %p84, %p85
      %p87 = scmp.ne.s32.totalorder %s79, %s81
      %p88 = scmp.eq.s32.totalorder %s17, 1
      %p89 = por %p87, %p88
      %p90 = scmp.ne.s32.totalorder %s81, %s82
      %p91 = scmp.eq.s32.totalorder %s17, 0
      %p92 = por %p90, %p91
      %p93 = scmp.ne.s32.totalorder %s81, %s82
      %p94 = scmp.eq.s32.totalorder %s18, 1
      %p95 = por %p93, %p94
      %p97 = scmp.ne.s32.totalorder %s82, %s96
      %p98 = scmp.eq.s32.totalorder %s18, 0
      %p99 = por %p97, %p98
      %s100 = ssub.s32 %s19, %s31
      %s101 = ssub.s32 %s20, %s27
      %s102 = sor.u32 %s100, %s101
      %p103 = scmp.eq.s32.totalorder %s102, 0
      %s105 = sadd.s32 %s104, 1
      %s106 = scalar_select %p103, %s104, %s105
      %p109 = pneg %p103
      %p110 = scmp.eq.s32.totalorder %s12, 1
      %p111 = por %p109, %p110
      %p112 = scmp.ne.s32.totalorder %s104, %s107
      %p113 = scmp.eq.s32.totalorder %s12, 0
      %p114 = por %p112, %p113
      %p115 = scmp.ne.s32.totalorder %s104, %s107
      %p116 = scmp.eq.s32.totalorder %s17, 1
      %p117 = por %p115, %p116
      %p118 = scmp.ne.s32.totalorder %s107, %s108
      %p119 = scmp.eq.s32.totalorder %s17, 0
      %p120 = por %p118, %p119
      %p121 = scmp.ne.s32.totalorder %s107, %s108
      %p122 = scmp.eq.s32.totalorder %s18, 1
      %p123 = por %p121, %p122
      %p125 = scmp.ne.s32.totalorder %s108, %s124
      %p126 = scmp.eq.s32.totalorder %s18, 0
      %p127 = por %p125, %p126
      %p128 = scmp.le.s32.totalorder 1, %s12
      %p129 = scmp.lt.s32.totalorder %s12, 3
      %p130 = pnand %p128, %p129
      %p131 = pneg %p130
      // Predicated region
      $region9: #{tpu_custom_call.1} parent=5 // pred_check
        _
      $region10: #{tpu_custom_call.1} parent=5 // pred_check_branch
        %133 = sbr.rel (%p130) target = $region12
      $region11: #{tpu_custom_call.1} parent=5 // pred_region
        %s134 = ssub.s32 %s12, 1
        // Predicated region
        $region13: #{tpu_custom_call.1} parent=11 // pred_check
          %p135 = pneg %p71
        $region14: #{tpu_custom_call.1} parent=11 // pred_check_branch
          %137 = sbr.rel (%p135) target = $region16
        $region15: #{tpu_custom_call.1} parent=11 // pred_region
          _
        $region16: #{tpu_custom_call.1} parent=11 // pred_fallthru
          _
        // Predicated region
        $region17: #{tpu_custom_call.1} parent=11 // pred_check
          %p138 = pneg %p92
        $region18: #{tpu_custom_call.1} parent=11 // pred_check_branch
          %140 = sbr.rel (%p138) target = $region20
        $region19: #{tpu_custom_call.1} parent=11 // pred_region
          _
        $region20: #{tpu_custom_call.1} parent=11 // pred_fallthru
          _
      $region12: #{tpu_custom_call.1} parent=5 // pred_fallthru
        _
      %p141 = scmp.lt.s32.totalorder %s12, 2
      // Predicated region
      $region21: #{tpu_custom_call.1} parent=5 // pred_check
        %p142 = pneg %p141
      $region22: #{tpu_custom_call.1} parent=5 // pred_check_branch
        %144 = sbr.rel (%p142) target = $region24
      $region23: #{tpu_custom_call.1} parent=5 // pred_region
        // Predicated region
        $region25: #{tpu_custom_call.1} parent=23 // pred_check
          %p145 = pneg %p44
        $region26: #{tpu_custom_call.1} parent=23 // pred_check_branch
          %147 = sbr.rel (%p145) target = $region28
        $region27: #{tpu_custom_call.1} parent=23 // pred_region
          %p148 = scmp.lt.s32.totalorder %s19, 1
          %s149 = scalar_select %p148, %s19, 1
          %s150 = smul.addr %s149, 36
          %s151 = smul.addr %s150, 8
          %s152 = scalar_lea.vmem %s0, %s151
        $region28: #{tpu_custom_call.1} parent=23 // pred_fallthru
          _
      $region24: #{tpu_custom_call.1} parent=5 // pred_fallthru
        _
      %p153 = scmp.le.s32.totalorder 1, %s12
      %p154 = scmp.lt.s32.totalorder %s12, 3
      %p155 = pnand %p153, %p154
      %p156 = pneg %p155
      // Predicated region
      $region29: #{tpu_custom_call.1} parent=5 // pred_check
        _
      $region30: #{tpu_custom_call.1} parent=5 // pred_check_branch
        %158 = sbr.rel (%p155) target = $region32
      $region31: #{tpu_custom_call.1} parent=5 // pred_region
        %s159 = ssub.s32 %s12, 1
        %p160 = scmp.lt.s32.totalorder %s21, 1
        %s161 = scalar_select %p160, %s21, 1
        %s162 = smul.addr %s161, 36
        %s163 = smul.addr %s162, 8
        %s164 = scalar_lea.vmem %s0, %s163
        %p165 = pneg %p50
        %p166 = pneg %p47
        %p167 = pneg %p71
        %p168 = pneg %p68
        %p169 = pneg %p92
        %p170 = pneg %p89
        %p171 = pneg %p120
        %p172 = pneg %p117
        %s173 = sand.u32 %s107, 1
        %s174 = scalar_lea.sflag [#allocation3], %s173
        %s175 = sand.u32 %s107, 1
        %s176 = smul.addr %s175, 256
        %s177 = scalar_lea.vmem [#allocation2], %s176
        %p178 = scmp.lt.s32.totalorder %s21, 1
        %s179 = scalar_select %p178, %s21, 1
        %s180 = smul.addr %s179, 36
        %s181 = smul.addr %s180, 8
        %s182 = scalar_lea.vmem %s0, %s181
        %s183 = smul.u32 32, %s22
        %s184 = smul.u32 %s22, 16
        %s185 = smul.u32 %s184, 16
        %s186 = scalar_lea.vmem %s182, %s185
        %v187 = vld [vmem:[%s186] sm:$0xff]
        %v188 = vld [vmem:[%s186 + $0x8] sm:$0xff]
        %v189 = vld [vmem:[%s186 + $0x10] sm:$0xff]
        %v190 = vld [vmem:[%s186 + $0x18] sm:$0xff]
        %v191 = vld [vmem:[%s186 + $0x20] sm:$0xff]
        %v192 = vld [vmem:[%s186 + $0x28] sm:$0xff]
        %v193 = vld [vmem:[%s186 + $0x30] sm:$0xff]
        %v194 = vld [vmem:[%s186 + $0x38] sm:$0xff]
        %v195 = vld [vmem:[%s186 + $0x40] sm:$0xff]
        %v196 = vld [vmem:[%s186 + $0x48] sm:$0xff]
        %v197 = vld [vmem:[%s186 + $0x50] sm:$0xff]
        %v198 = vld [vmem:[%s186 + $0x58] sm:$0xff]
        %v199 = vld [vmem:[%s186 + $0x60] sm:$0xff]
        %v200 = vld [vmem:[%s186 + $0x68] sm:$0xff]
        %v201 = vld [vmem:[%s186 + $0x70] sm:$0xff]
        %v202 = vld [vmem:[%s186 + $0x78] sm:$0xff]
        %v203 = vld [vmem:[%s186 + $0x80] sm:$0xff]
        %v204 = vld [vmem:[%s186 + $0x88] sm:$0xff]
        %v205 = vld [vmem:[%s186 + $0x90] sm:$0xff]
        %v206 = vld [vmem:[%s186 + $0x98] sm:$0xff]
        %v207 = vld [vmem:[%s186 + $0xa0] sm:$0xff]
        %v208 = vld [vmem:[%s186 + $0xa8] sm:$0xff]
        %v209 = vld [vmem:[%s186 + $0xb0] sm:$0xff]
        %v210 = vld [vmem:[%s186 + $0xb8] sm:$0xff]
        %v211 = vld [vmem:[%s186 + $0xc0] sm:$0xff]
        %v212 = vld [vmem:[%s186 + $0xc8] sm:$0xff]
        %v213 = vld [vmem:[%s186 + $0xd0] sm:$0xff]
        %v214 = vld [vmem:[%s186 + $0xd8] sm:$0xff]
        %v215 = vld [vmem:[%s186 + $0xe0] sm:$0xff]
        %v216 = vld [vmem:[%s186 + $0xe8] sm:$0xff]
        %v217 = vld [vmem:[%s186 + $0xf0] sm:$0xff]
        %v218 = vld [vmem:[%s186 + $0xf8] sm:$0xff]
        %s219 = sadd.s32 %s184, 1
        %s220 = smul.u32 %s219, 16
        %s221 = scalar_lea.vmem %s182, %s220
        %v222 = vld [vmem:[%s221] sm:$0xff]
        %v223 = vld [vmem:[%s221 + $0x8] sm:$0xff]
        %v224 = vld [vmem:[%s221 + $0x10] sm:$0xff]
        %v225 = vld [vmem:[%s221 + $0x18] sm:$0xff]
        %v226 = vld [vmem:[%s221 + $0x20] sm:$0xff]
        %v227 = vld [vmem:[%s221 + $0x28] sm:$0xff]
        %v228 = vld [vmem:[%s221 + $0x30] sm:$0xff]
        %v229 = vld [vmem:[%s221 + $0x38] sm:$0xff]
        %v230 = vld [vmem:[%s221 + $0x40] sm:$0xff]
        %v231 = vld [vmem:[%s221 + $0x48] sm:$0xff]
        %v232 = vld [vmem:[%s221 + $0x50] sm:$0xff]
        %v233 = vld [vmem:[%s221 + $0x58] sm:$0xff]
        %v234 = vld [vmem:[%s221 + $0x60] sm:$0xff]
        %v235 = vld [vmem:[%s221 + $0x68] sm:$0xff]
        %v236 = vld [vmem:[%s221 + $0x70] sm:$0xff]
        %v237 = vld [vmem:[%s221 + $0x78] sm:$0xff]
        %v238 = vld [vmem:[%s221 + $0x80] sm:$0xff]
        %v239 = vld [vmem:[%s221 + $0x88] sm:$0xff]
        %v240 = vld [vmem:[%s221 + $0x90] sm:$0xff]
        %v241 = vld [vmem:[%s221 + $0x98] sm:$0xff]
        %v242 = vld [vmem:[%s221 + $0xa0] sm:$0xff]
        %v243 = vld [vmem:[%s221 + $0xa8] sm:$0xff]
        %v244 = vld [vmem:[%s221 + $0xb0] sm:$0xff]
        %v245 = vld [vmem:[%s221 + $0xb8] sm:$0xff]
        %v246 = vld [vmem:[%s221 + $0xc0] sm:$0xff]
        %v247 = vld [vmem:[%s221 + $0xc8] sm:$0xff]
        %v248 = vld [vmem:[%s221 + $0xd0] sm:$0xff]
        %v249 = vld [vmem:[%s221 + $0xd8] sm:$0xff]
        %v250 = vld [vmem:[%s221 + $0xe0] sm:$0xff]
        %v251 = vld [vmem:[%s221 + $0xe8] sm:$0xff]
        %v252 = vld [vmem:[%s221 + $0xf0] sm:$0xff]
        %v253 = vld [vmem:[%s221 + $0xf8] sm:$0xff]
        %s254 = sadd.s32 %s184, 2
        %s255 = smul.u32 %s254, 16
        %s256 = scalar_lea.vmem %s182, %s255
        %v257 = vld [vmem:[%s256] sm:$0xff]
        %v258 = vld [vmem:[%s256 + $0x8] sm:$0xff]
        %v259 = vld [vmem:[%s256 + $0x10] sm:$0xff]
        %v260 = vld [vmem:[%s256 + $0x18] sm:$0xff]
        %v261 = vld [vmem:[%s256 + $0x20] sm:$0xff]
        %v262 = vld [vmem:[%s256 + $0x28] sm:$0xff]
        %v263 = vld [vmem:[%s256 + $0x30] sm:$0xff]
        %v264 = vld [vmem:[%s256 + $0x38] sm:$0xff]
        %v265 = vld [vmem:[%s256 + $0x40] sm:$0xff]
        %v266 = vld [vmem:[%s256 + $0x48] sm:$0xff]
        %v267 = vld [vmem:[%s256 + $0x50] sm:$0xff]
        %v268 = vld [vmem:[%s256 + $0x58] sm:$0xff]
        %v269 = vld [vmem:[%s256 + $0x60] sm:$0xff]
        %v270 = vld [vmem:[%s256 + $0x68] sm:$0xff]
        %v271 = vld [vmem:[%s256 + $0x70] sm:$0xff]
        %v272 = vld [vmem:[%s256 + $0x78] sm:$0xff]
        %v273 = vld [vmem:[%s256 + $0x80] sm:$0xff]
        %v274 = vld [vmem:[%s256 + $0x88] sm:$0xff]
        %v275 = vld [vmem:[%s256 + $0x90] sm:$0xff]
        %v276 = vld [vmem:[%s256 + $0x98] sm:$0xff]
        %v277 = vld [vmem:[%s256 + $0xa0] sm:$0xff]
        %v278 = vld [vmem:[%s256 + $0xa8] sm:$0xff]
        %v279 = vld [vmem:[%s256 + $0xb0] sm:$0xff]
        %v280 = vld [vmem:[%s256 + $0xb8] sm:$0xff]
        %v281 = vld [vmem:[%s256 + $0xc0] sm:$0xff]
        %v282 = vld [vmem:[%s256 + $0xc8] sm:$0xff]
        %v283 = vld [vmem:[%s256 + $0xd0] sm:$0xff]
        %v284 = vld [vmem:[%s256 + $0xd8] sm:$0xff]
        %v285 = vld [vmem:[%s256 + $0xe0] sm:$0xff]
        %v286 = vld [vmem:[%s256 + $0xe8] sm:$0xff]
        %v287 = vld [vmem:[%s256 + $0xf0] sm:$0xff]
        %v288 = vld [vmem:[%s256 + $0xf8] sm:$0xff]
        %321 = vrot.lane.b32.xlu0 %v222, 12
        %v322 = vpop.permute.xlu0 %321
        %323 = vrot.lane.b32.xlu0 %v223, 12
        %v324 = vpop.permute.xlu0 %323
        %325 = vrot.lane.b32.xlu0 %v224, 12
        %v326 = vpop.permute.xlu0 %325
        %327 = vrot.lane.b32.xlu0 %v225, 12
        %v328 = vpop.permute.xlu0 %327
        %329 = vrot.lane.b32.xlu0 %v226, 12
        %v330 = vpop.permute.xlu0 %329
        %331 = vrot.lane.b32.xlu0 %v227, 12
        %v332 = vpop.permute.xlu0 %331
        %333 = vrot.lane.b32.xlu0 %v228, 12
        %v334 = vpop.permute.xlu0 %333
        %335 = vrot.lane.b32.xlu0 %v229, 12
        %v336 = vpop.permute.xlu0 %335
        %337 = vrot.lane.b32.xlu0 %v230, 12
        %v338 = vpop.permute.xlu0 %337
        %339 = vrot.lane.b32.xlu0 %v231, 12
        %v340 = vpop.permute.xlu0 %339
        %341 = vrot.lane.b32.xlu0 %v232, 12
        %v342 = vpop.permute.xlu0 %341
        %343 = vrot.lane.b32.xlu0 %v233, 12
        %v344 = vpop.permute.xlu0 %343
        %345 = vrot.lane.b32.xlu0 %v234, 12
        %v346 = vpop.permute.xlu0 %345
        %347 = vrot.lane.b32.xlu0 %v235, 12
        %v348 = vpop.permute.xlu0 %347
        %349 = vrot.lane.b32.xlu0 %v236, 12
        %v350 = vpop.permute.xlu0 %349
        %351 = vrot.lane.b32.xlu0 %v237, 12
        %v352 = vpop.permute.xlu0 %351
        %353 = vrot.lane.b32.xlu0 %v238, 12
        %v354 = vpop.permute.xlu0 %353
        %355 = vrot.lane.b32.xlu0 %v239, 12
        %v356 = vpop.permute.xlu0 %355
        %357 = vrot.lane.b32.xlu0 %v240, 12
        %v358 = vpop.permute.xlu0 %357
        %359 = vrot.lane.b32.xlu0 %v241, 12
        %v360 = vpop.permute.xlu0 %359
        %361 = vrot.lane.b32.xlu0 %v242, 12
        %v362 = vpop.permute.xlu0 %361
        %363 = vrot.lane.b32.xlu0 %v243, 12
        %v364 = vpop.permute.xlu0 %363
        %365 = vrot.lane.b32.xlu0 %v244, 12
        %v366 = vpop.permute.xlu0 %365
        %367 = vrot.lane.b32.xlu0 %v245, 12
        %v368 = vpop.permute.xlu0 %367
        %369 = vrot.lane.b32.xlu0 %v246, 12
        %v370 = vpop.permute.xlu0 %369
        %371 = vrot.lane.b32.xlu0 %v247, 12
        %v372 = vpop.permute.xlu0 %371
        %373 = vrot.lane.b32.xlu0 %v248, 12
        %v374 = vpop.permute.xlu0 %373
        %375 = vrot.lane.b32.xlu0 %v249, 12
        %v376 = vpop.permute.xlu0 %375
        %377 = vrot.lane.b32.xlu0 %v250, 12
        %v378 = vpop.permute.xlu0 %377
        %379 = vrot.lane.b32.xlu0 %v251, 12
        %v380 = vpop.permute.xlu0 %379
        %381 = vrot.lane.b32.xlu0 %v252, 12
        %v382 = vpop.permute.xlu0 %381
        %383 = vrot.lane.b32.xlu0 %v253, 12
        %v384 = vpop.permute.xlu0 %383
        %449 = vrot.lane.b32.xlu0 %v257, 24
        %v450 = vpop.permute.xlu0 %449
        %451 = vrot.lane.b32.xlu0 %v258, 24
        %v452 = vpop.permute.xlu0 %451
        %453 = vrot.lane.b32.xlu0 %v259, 24
        %v454 = vpop.permute.xlu0 %453
        %455 = vrot.lane.b32.xlu0 %v260, 24
        %v456 = vpop.permute.xlu0 %455
        %457 = vrot.lane.b32.xlu0 %v261, 24
        %v458 = vpop.permute.xlu0 %457
        %459 = vrot.lane.b32.xlu0 %v262, 24
        %v460 = vpop.permute.xlu0 %459
        %461 = vrot.lane.b32.xlu0 %v263, 24
        %v462 = vpop.permute.xlu0 %461
        %463 = vrot.lane.b32.xlu0 %v264, 24
        %v464 = vpop.permute.xlu0 %463
        %465 = vrot.lane.b32.xlu0 %v265, 24
        %v466 = vpop.permute.xlu0 %465
        %467 = vrot.lane.b32.xlu0 %v266, 24
        %v468 = vpop.permute.xlu0 %467
        %469 = vrot.lane.b32.xlu0 %v267, 24
        %v470 = vpop.permute.xlu0 %469
        %471 = vrot.lane.b32.xlu0 %v268, 24
        %v472 = vpop.permute.xlu0 %471
        %473 = vrot.lane.b32.xlu0 %v269, 24
        %v474 = vpop.permute.xlu0 %473
        %475 = vrot.lane.b32.xlu0 %v270, 24
        %v476 = vpop.permute.xlu0 %475
        %477 = vrot.lane.b32.xlu0 %v271, 24
        %v478 = vpop.permute.xlu0 %477
        %479 = vrot.lane.b32.xlu0 %v272, 24
        %v480 = vpop.permute.xlu0 %479
        %481 = vrot.lane.b32.xlu0 %v273, 24
        %v482 = vpop.permute.xlu0 %481
        %483 = vrot.lane.b32.xlu0 %v274, 24
        %v484 = vpop.permute.xlu0 %483
        %485 = vrot.lane.b32.xlu0 %v275, 24
        %v486 = vpop.permute.xlu0 %485
        %487 = vrot.lane.b32.xlu0 %v276, 24
        %v488 = vpop.permute.xlu0 %487
        %489 = vrot.lane.b32.xlu0 %v277, 24
        %v490 = vpop.permute.xlu0 %489
        %491 = vrot.lane.b32.xlu0 %v278, 24
        %v492 = vpop.permute.xlu0 %491
        %493 = vrot.lane.b32.xlu0 %v279, 24
        %v494 = vpop.permute.xlu0 %493
        %495 = vrot.lane.b32.xlu0 %v280, 24
        %v496 = vpop.permute.xlu0 %495
        %497 = vrot.lane.b32.xlu0 %v281, 24
        %v498 = vpop.permute.xlu0 %497
        %499 = vrot.lane.b32.xlu0 %v282, 24
        %v500 = vpop.permute.xlu0 %499
        %501 = vrot.lane.b32.xlu0 %v283, 24
        %v502 = vpop.permute.xlu0 %501
        %503 = vrot.lane.b32.xlu0 %v284, 24
        %v504 = vpop.permute.xlu0 %503
        %505 = vrot.lane.b32.xlu0 %v285, 24
        %v506 = vpop.permute.xlu0 %505
        %507 = vrot.lane.b32.xlu0 %v286, 24
        %v508 = vpop.permute.xlu0 %507
        %509 = vrot.lane.b32.xlu0 %v287, 24
        %v510 = vpop.permute.xlu0 %509
        %511 = vrot.lane.b32.xlu0 %v288, 24
        %v512 = vpop.permute.xlu0 %511
        %vm545 = vcmask 97280
        %v546 = vsel %vm545, %v187, %v322
        %v547 = vsel %vm545, %v188, %v324
        %v548 = vsel %vm545, %v189, %v326
        %v549 = vsel %vm545, %v190, %v328
        %v550 = vsel %vm545, %v191, %v330
        %v551 = vsel %vm545, %v192, %v332
        %v552 = vsel %vm545, %v193, %v334
        %v553 = vsel %vm545, %v194, %v336
        %v554 = vsel %vm545, %v195, %v338
        %v555 = vsel %vm545, %v196, %v340
        %v556 = vsel %vm545, %v197, %v342
        %v557 = vsel %vm545, %v198, %v344
        %v558 = vsel %vm545, %v199, %v346
        %v559 = vsel %vm545, %v200, %v348
        %v560 = vsel %vm545, %v201, %v350
        %v561 = vsel %vm545, %v202, %v352
        %v562 = vsel %vm545, %v203, %v354
        %v563 = vsel %vm545, %v204, %v356
        %v564 = vsel %vm545, %v205, %v358
        %v565 = vsel %vm545, %v206, %v360
        %v566 = vsel %vm545, %v207, %v362
        %v567 = vsel %vm545, %v208, %v364
        %v568 = vsel %vm545, %v209, %v366
        %v569 = vsel %vm545, %v210, %v368
        %v570 = vsel %vm545, %v211, %v370
        %v571 = vsel %vm545, %v212, %v372
        %v572 = vsel %vm545, %v213, %v374
        %v573 = vsel %vm545, %v214, %v376
        %v574 = vsel %vm545, %v215, %v378
        %v575 = vsel %vm545, %v216, %v380
        %v576 = vsel %vm545, %v217, %v382
        %v577 = vsel %vm545, %v218, %v384
        %vm578 = vcmask 195584
        %v579 = vsel %vm578, %v546, %v450
        %v580 = vsel %vm578, %v547, %v452
        %v581 = vsel %vm578, %v548, %v454
        %v582 = vsel %vm578, %v549, %v456
        %v583 = vsel %vm578, %v550, %v458
        %v584 = vsel %vm578, %v551, %v460
        %v585 = vsel %vm578, %v552, %v462
        %v586 = vsel %vm578, %v553, %v464
        %v587 = vsel %vm578, %v554, %v466
        %v588 = vsel %vm578, %v555, %v468
        %v589 = vsel %vm578, %v556, %v470
        %v590 = vsel %vm578, %v557, %v472
        %v591 = vsel %vm578, %v558, %v474
        %v592 = vsel %vm578, %v559, %v476
        %v593 = vsel %vm578, %v560, %v478
        %v594 = vsel %vm578, %v561, %v480
        %v595 = vsel %vm578, %v562, %v482
        %v596 = vsel %vm578, %v563, %v484
        %v597 = vsel %vm578, %v564, %v486
        %v598 = vsel %vm578, %v565, %v488
        %v599 = vsel %vm578, %v566, %v490
        %v600 = vsel %vm578, %v567, %v492
        %v601 = vsel %vm578, %v568, %v494
        %v602 = vsel %vm578, %v569, %v496
        %v603 = vsel %vm578, %v570, %v498
        %v604 = vsel %vm578, %v571, %v500
        %v605 = vsel %vm578, %v572, %v502
        %v606 = vsel %vm578, %v573, %v504
        %v607 = vsel %vm578, %v574, %v506
        %v608 = vsel %vm578, %v575, %v508
        %v609 = vsel %vm578, %v576, %v510
        %v610 = vsel %vm578, %v577, %v512
        %v611 = vld [vmem:[%s1] sm:$0xff]
        %v612 = vld [vmem:[%s1 + $0x8] sm:$0xff]
        %v613 = vld [vmem:[%s1 + $0x10] sm:$0xff]
        %v614 = vld [vmem:[%s1 + $0x18] sm:$0xff]
        %v615 = vld [vmem:[%s1 + $0x20] sm:$0xf]
        %v616 = vld [vmem:[%s2] sm:$0x1]
        %v618 = vlaneseq
        %v619 = vshrl.u32 %v618, 7
        %v620 = vsub.s32 0, %v619
        %v621 = vrot.slane %v616, %v620
        %vm623 = vcmask 293888
        %v625 = vsel %vm623, %v579, 0
        %v628 = vsel %vm623, %v580, 0
        %v631 = vsel %vm623, %v581, 0
        %v634 = vsel %vm623, %v582, 0
        %v637 = vsel %vm623, %v583, 0
        %v640 = vsel %vm623, %v584, 0
        %v643 = vsel %vm623, %v585, 0
        %v646 = vsel %vm623, %v586, 0
        %v649 = vsel %vm623, %v587, 0
        %v652 = vsel %vm623, %v588, 0
        %v655 = vsel %vm623, %v589, 0
        %v658 = vsel %vm623, %v590, 0
        %v661 = vsel %vm623, %v591, 0
        %v664 = vsel %vm623, %v592, 0
        %v667 = vsel %vm623, %v593, 0
        %v670 = vsel %vm623, %v594, 0
        %v673 = vsel %vm623, %v595, 0
        %v676 = vsel %vm623, %v596, 0
        %v679 = vsel %vm623, %v597, 0
        %v682 = vsel %vm623, %v598, 0
        %v685 = vsel %vm623, %v599, 0
        %v688 = vsel %vm623, %v600, 0
        %v691 = vsel %vm623, %v601, 0
        %v694 = vsel %vm623, %v602, 0
        %v697 = vsel %vm623, %v603, 0
        %v700 = vsel %vm623, %v604, 0
        %v703 = vsel %vm623, %v605, 0
        %v706 = vsel %vm623, %v606, 0
        %v709 = vsel %vm623, %v607, 0
        %v712 = vsel %vm623, %v608, 0
        %v715 = vsel %vm623, %v609, 0
        %v718 = vsel %vm623, %v610, 0
        %vm720 = vcmask 1043456
        %v722 = vsel %vm720, %v615, 0
        %724 = vmatprep.subr.mxu0 0.0
        %725 = vmatpush1.msra.mxu0 0.0
        %726 = vmatprep.subr.mxu0 0.0
        %727 = vmatpush1.msra.mxu0 0.0
        %728 = vmatprep.subr.mxu0 0.0
        %729 = vmatpush1.msra.mxu0 0.0
        %730 = vmatprep.subr.mxu0 0.0
        %731 = vmatpush1.msra.mxu0 0.0
        %732 = vmatprep.subr.mxu0 0.0
        %733 = vmatpush1.msra.mxu0 0.0
        %734 = vmatprep.subr.mxu0 0.0
        %735 = vmatpush1.msra.mxu0 0.0
        %736 = vmatprep.subr.mxu0 0.0
        %737 = vmatpush1.msra.mxu0 0.0
        %738 = vmatprep.subr.mxu0 0.0
        %739 = vmatpush1.msra.mxu0 0.0
        %740 = vmatprep.subr.mxu0 0.0
        %741 = vmatpush1.msra.mxu0 0.0
        %742 = vmatprep.subr.mxu0 0.0
        %743 = vmatpush1.msra.mxu0 0.0
        %744 = vmatprep.subr.mxu0 0.0
        %745 = vmatpush1.msra.mxu0 0.0
        %746 = vmatprep.subr.mxu0 0.0
        %747 = vmatpush1.msra.mxu0 %v722
        %748 = vmatprep.subr.mxu0 0.0
        %749 = vmatpush1.msra.mxu0 %v614
        %750 = vmatprep.subr.mxu0 0.0
        %751 = vmatpush1.msra.mxu0 %v613
        %752 = vmatprep.subr.mxu0 0.0
        %753 = vmatpush1.msra.mxu0 %v612
        %754 = vmatprep.subr.mxu0 0.0
        %755 = vmatpush1.msra.mxu0 %v611
        %756 = vmatprep.subr.mxu0 0.0
        %757 = vmatpush2.msra.mxu0 0.0
        %758 = vmatprep.subr.mxu0 0.0
        %759 = vmatpush2.msra.mxu0 0.0
        %760 = vmatprep.subr.mxu0 0.0
        %761 = vmatpush2.msra.mxu0 0.0
        %762 = vmatprep.subr.mxu0 0.0
        %763 = vmatpush2.msra.mxu0 0.0
        %764 = vmatprep.subr.mxu0 0.0
        %765 = vmatpush2.msra.mxu0 0.0
        %766 = vmatprep.subr.mxu0 0.0
        %767 = vmatpush2.msra.mxu0 0.0
        %768 = vmatprep.subr.mxu0 0.0
        %769 = vmatpush2.msra.mxu0 0.0
        %770 = vmatprep.subr.mxu0 0.0
        %771 = vmatpush2.msra.mxu0 0.0
        %772 = vmatprep.subr.mxu0 0.0
        %773 = vmatpush2.msra.mxu0 0.0
        %774 = vmatprep.subr.mxu0 0.0
        %775 = vmatpush2.msra.mxu0 0.0
        %776 = vmatprep.subr.mxu0 0.0
        %777 = vmatpush2.msra.mxu0 0.0
        %778 = vmatprep.subr.mxu0 0.0
        %779 = vmatpush2.msra.mxu0 0.0
        %780 = vmatprep.subr.mxu0 0.0
        %781 = vmatpush2.msra.mxu0 0.0
        %782 = vmatprep.subr.mxu0 0.0
        %783 = vmatpush2.msra.mxu0 0.0
        %784 = vmatprep.subr.mxu0 0.0
        %785 = vmatpush2.msra.mxu0 0.0
        %786 = vmatprep.subr.mxu0 0.0
        %787 = vmatpush2.msra.mxu0 0.0
        %788 = vmatprep.mubr.f32.mxu0 0.0
        %789 = vmatmul.mubr.f32.gmra.mxu0 %v625
        %v790 = vpop.f32.mrf.mxu0
        %v791 = vadd.f32 %v621, %v790
        %v792 = vpop.f32.mrf.mxu0
        %793 = vmatprep.mubr.f32.mxu0 0.0
        %794 = vmatmul.mubr.f32.gmra.mxu0 %v628
        %v795 = vpop.f32.mrf.mxu0
        %v796 = vadd.f32 %v621, %v795
        %v797 = vpop.f32.mrf.mxu0
        %798 = vmatprep.mubr.f32.mxu0 0.0
        %799 = vmatmul.mubr.f32.gmra.mxu0 %v631
        %v800 = vpop.f32.mrf.mxu0
        %v801 = vadd.f32 %v621, %v800
        %v802 = vpop.f32.mrf.mxu0
        %803 = vmatprep.mubr.f32.mxu0 0.0
        %804 = vmatmul.mubr.f32.gmra.mxu0 %v634
        %v805 = vpop.f32.mrf.mxu0
        %v806 = vadd.f32 %v621, %v805
        %v807 = vpop.f32.mrf.mxu0
        %808 = vmatprep.mubr.f32.mxu0 0.0
        %809 = vmatmul.mubr.f32.gmra.mxu0 %v637
        %v810 = vpop.f32.mrf.mxu0
        %v811 = vadd.f32 %v621, %v810
        %v812 = vpop.f32.mrf.mxu0
        %813 = vmatprep.mubr.f32.mxu0 0.0
        %814 = vmatmul.mubr.f32.gmra.mxu0 %v640
        %v815 = vpop.f32.mrf.mxu0
        %v816 = vadd.f32 %v621, %v815
        %v817 = vpop.f32.mrf.mxu0
        %818 = vmatprep.mubr.f32.mxu0 0.0
        %819 = vmatmul.mubr.f32.gmra.mxu0 %v643
        %v820 = vpop.f32.mrf.mxu0
        %v821 = vadd.f32 %v621, %v820
        %v822 = vpop.f32.mrf.mxu0
        %823 = vmatprep.mubr.f32.mxu0 0.0
        %824 = vmatmul.mubr.f32.gmra.mxu0 %v646
        %v825 = vpop.f32.mrf.mxu0
        %v826 = vadd.f32 %v621, %v825
        %v827 = vpop.f32.mrf.mxu0
        %828 = vmatprep.mubr.f32.mxu0 0.0
        %829 = vmatmul.mubr.f32.gmra.mxu0 %v649
        %v830 = vpop.f32.mrf.mxu0
        %v831 = vadd.f32 %v621, %v830
        %v832 = vpop.f32.mrf.mxu0
        %833 = vmatprep.mubr.f32.mxu0 0.0
        %834 = vmatmul.mubr.f32.gmra.mxu0 %v652
        %v835 = vpop.f32.mrf.mxu0
        %v836 = vadd.f32 %v621, %v835
        %v837 = vpop.f32.mrf.mxu0
        %838 = vmatprep.mubr.f32.mxu0 0.0
        %839 = vmatmul.mubr.f32.gmra.mxu0 %v655
        %v840 = vpop.f32.mrf.mxu0
        %v841 = vadd.f32 %v621, %v840
        %v842 = vpop.f32.mrf.mxu0
        %843 = vmatprep.mubr.f32.mxu0 0.0
        %844 = vmatmul.mubr.f32.gmra.mxu0 %v658
        %v845 = vpop.f32.mrf.mxu0
        %v846 = vadd.f32 %v621, %v845
        %v847 = vpop.f32.mrf.mxu0
        %848 = vmatprep.mubr.f32.mxu0 0.0
        %849 = vmatmul.mubr.f32.gmra.mxu0 %v661
        %v850 = vpop.f32.mrf.mxu0
        %v851 = vadd.f32 %v621, %v850
        %v852 = vpop.f32.mrf.mxu0
        %853 = vmatprep.mubr.f32.mxu0 0.0
        %854 = vmatmul.mubr.f32.gmra.mxu0 %v664
        %v855 = vpop.f32.mrf.mxu0
        %v856 = vadd.f32 %v621, %v855
        %v857 = vpop.f32.mrf.mxu0
        %858 = vmatprep.mubr.f32.mxu0 0.0
        %859 = vmatmul.mubr.f32.gmra.mxu0 %v667
        %v860 = vpop.f32.mrf.mxu0
        %v861 = vadd.f32 %v621, %v860
        %v862 = vpop.f32.mrf.mxu0
        %863 = vmatprep.mubr.f32.mxu0 0.0
        %864 = vmatmul.mubr.f32.gmra.mxu0 %v670
        %v865 = vpop.f32.mrf.mxu0
        %v866 = vadd.f32 %v621, %v865
        %v867 = vpop.f32.mrf.mxu0
        %868 = vmatprep.mubr.f32.mxu0 0.0
        %869 = vmatmul.mubr.f32.gmra.mxu0 %v673
        %v870 = vpop.f32.mrf.mxu0
        %v871 = vadd.f32 %v621, %v870
        %v872 = vpop.f32.mrf.mxu0
        %873 = vmatprep.mubr.f32.mxu0 0.0
        %874 = vmatmul.mubr.f32.gmra.mxu0 %v676
        %v875 = vpop.f32.mrf.mxu0
        %v876 = vadd.f32 %v621, %v875
        %v877 = vpop.f32.mrf.mxu0
        %878 = vmatprep.mubr.f32.mxu0 0.0
        %879 = vmatmul.mubr.f32.gmra.mxu0 %v679
        %v880 = vpop.f32.mrf.mxu0
        %v881 = vadd.f32 %v621, %v880
        %v882 = vpop.f32.mrf.mxu0
        %883 = vmatprep.mubr.f32.mxu0 0.0
        %884 = vmatmul.mubr.f32.gmra.mxu0 %v682
        %v885 = vpop.f32.mrf.mxu0
        %v886 = vadd.f32 %v621, %v885
        %v887 = vpop.f32.mrf.mxu0
        %888 = vmatprep.mubr.f32.mxu0 0.0
        %889 = vmatmul.mubr.f32.gmra.mxu0 %v685
        %v890 = vpop.f32.mrf.mxu0
        %v891 = vadd.f32 %v621, %v890
        %v892 = vpop.f32.mrf.mxu0
        %893 = vmatprep.mubr.f32.mxu0 0.0
        %894 = vmatmul.mubr.f32.gmra.mxu0 %v688
        %v895 = vpop.f32.mrf.mxu0
        %v896 = vadd.f32 %v621, %v895
        %v897 = vpop.f32.mrf.mxu0
        %898 = vmatprep.mubr.f32.mxu0 0.0
        %899 = vmatmul.mubr.f32.gmra.mxu0 %v691
        %v900 = vpop.f32.mrf.mxu0
        %v901 = vadd.f32 %v621, %v900
        %v902 = vpop.f32.mrf.mxu0
        %903 = vmatprep.mubr.f32.mxu0 0.0
        %904 = vmatmul.mubr.f32.gmra.mxu0 %v694
        %v905 = vpop.f32.mrf.mxu0
        %v906 = vadd.f32 %v621, %v905
        %v907 = vpop.f32.mrf.mxu0
        %908 = vmatprep.mubr.f32.mxu0 0.0
        %909 = vmatmul.mubr.f32.gmra.mxu0 %v697
        %v910 = vpop.f32.mrf.mxu0
        %v911 = vadd.f32 %v621, %v910
        %v912 = vpop.f32.mrf.mxu0
        %913 = vmatprep.mubr.f32.mxu0 0.0
        %914 = vmatmul.mubr.f32.gmra.mxu0 %v700
        %v915 = vpop.f32.mrf.mxu0
        %v916 = vadd.f32 %v621, %v915
        %v917 = vpop.f32.mrf.mxu0
        %918 = vmatprep.mubr.f32.mxu0 0.0
        %919 = vmatmul.mubr.f32.gmra.mxu0 %v703
        %v920 = vpop.f32.mrf.mxu0
        %v921 = vadd.f32 %v621, %v920
        %v922 = vpop.f32.mrf.mxu0
        %923 = vmatprep.mubr.f32.mxu0 0.0
        %924 = vmatmul.mubr.f32.gmra.mxu0 %v706
        %v925 = vpop.f32.mrf.mxu0
        %v926 = vadd.f32 %v621, %v925
        %v927 = vpop.f32.mrf.mxu0
        %928 = vmatprep.mubr.f32.mxu0 0.0
        %929 = vmatmul.mubr.f32.gmra.mxu0 %v709
        %v930 = vpop.f32.mrf.mxu0
        %v931 = vadd.f32 %v621, %v930
        %v932 = vpop.f32.mrf.mxu0
        %933 = vmatprep.mubr.f32.mxu0 0.0
        %934 = vmatmul.mubr.f32.gmra.mxu0 %v712
        %v935 = vpop.f32.mrf.mxu0
        %v936 = vadd.f32 %v621, %v935
        %v937 = vpop.f32.mrf.mxu0
        %938 = vmatprep.mubr.f32.mxu0 0.0
        %939 = vmatmul.mubr.f32.gmra.mxu0 %v715
        %v940 = vpop.f32.mrf.mxu0
        %v941 = vadd.f32 %v621, %v940
        %v942 = vpop.f32.mrf.mxu0
        %943 = vmatprep.mubr.f32.mxu0 0.0
        %944 = vmatmul.mubr.f32.gmra.mxu0 %v718
        %v945 = vpop.f32.mrf.mxu0
        %v946 = vadd.f32 %v621, %v945
        %v947 = vpop.f32.mrf.mxu0
        %948 = vdwg.mxu0
        %vm949 = vcmp.ge.f32.partialorder %v791, 0.0
        %vm950 = vcmp.ge.f32.partialorder %v796, 0.0
        %vm951 = vcmp.ge.f32.partialorder %v801, 0.0
        %vm952 = vcmp.ge.f32.partialorder %v806, 0.0
        %vm953 = vcmp.ge.f32.partialorder %v811, 0.0
        %vm954 = vcmp.ge.f32.partialorder %v816, 0.0
        %vm955 = vcmp.ge.f32.partialorder %v821, 0.0
        %vm956 = vcmp.ge.f32.partialorder %v826, 0.0
        %vm957 = vcmp.ge.f32.partialorder %v831, 0.0
        %vm958 = vcmp.ge.f32.partialorder %v836, 0.0
        %vm959 = vcmp.ge.f32.partialorder %v841, 0.0
        %vm960 = vcmp.ge.f32.partialorder %v846, 0.0
        %vm961 = vcmp.ge.f32.partialorder %v851, 0.0
        %vm962 = vcmp.ge.f32.partialorder %v856, 0.0
        %vm963 = vcmp.ge.f32.partialorder %v861, 0.0
        %vm964 = vcmp.ge.f32.partialorder %v866, 0.0
        %vm965 = vcmp.ge.f32.partialorder %v871, 0.0
        %vm966 = vcmp.ge.f32.partialorder %v876, 0.0
        %vm967 = vcmp.ge.f32.partialorder %v881, 0.0
        %vm968 = vcmp.ge.f32.partialorder %v886, 0.0
        %vm969 = vcmp.ge.f32.partialorder %v891, 0.0
        %vm970 = vcmp.ge.f32.partialorder %v896, 0.0
        %vm971 = vcmp.ge.f32.partialorder %v901, 0.0
        %vm972 = vcmp.ge.f32.partialorder %v906, 0.0
        %vm973 = vcmp.ge.f32.partialorder %v911, 0.0
        %vm974 = vcmp.ge.f32.partialorder %v916, 0.0
        %vm975 = vcmp.ge.f32.partialorder %v921, 0.0
        %vm976 = vcmp.ge.f32.partialorder %v926, 0.0
        %vm977 = vcmp.ge.f32.partialorder %v931, 0.0
        %vm978 = vcmp.ge.f32.partialorder %v936, 0.0
        %vm979 = vcmp.ge.f32.partialorder %v941, 0.0
        %vm980 = vcmp.ge.f32.partialorder %v946, 0.0
        %v981 = vmul.f32 %v791, 0.2
        %v982 = vmul.f32 %v796, 0.2
        %v983 = vmul.f32 %v801, 0.2
        %v984 = vmul.f32 %v806, 0.2
        %v985 = vmul.f32 %v811, 0.2
        %v986 = vmul.f32 %v816, 0.2
        %v987 = vmul.f32 %v821, 0.2
        %v988 = vmul.f32 %v826, 0.2
        %v989 = vmul.f32 %v831, 0.2
        %v990 = vmul.f32 %v836, 0.2
        %v991 = vmul.f32 %v841, 0.2
        %v992 = vmul.f32 %v846, 0.2
        %v993 = vmul.f32 %v851, 0.2
        %v994 = vmul.f32 %v856, 0.2
        %v995 = vmul.f32 %v861, 0.2
        %v996 = vmul.f32 %v866, 0.2
        %v997 = vmul.f32 %v871, 0.2
        %v998 = vmul.f32 %v876, 0.2
        %v999 = vmul.f32 %v881, 0.2
        %v1000 = vmul.f32 %v886, 0.2
        %v1001 = vmul.f32 %v891, 0.2
        %v1002 = vmul.f32 %v896, 0.2
        %v1003 = vmul.f32 %v901, 0.2
        %v1004 = vmul.f32 %v906, 0.2
        %v1005 = vmul.f32 %v911, 0.2
        %v1006 = vmul.f32 %v916, 0.2
        %v1007 = vmul.f32 %v921, 0.2
        %v1008 = vmul.f32 %v926, 0.2
        %v1009 = vmul.f32 %v931, 0.2
        %v1010 = vmul.f32 %v936, 0.2
        %v1011 = vmul.f32 %v941, 0.2
        %v1012 = vmul.f32 %v946, 0.2
        %v1013 = vsel %vm949, %v791, %v981
        %v1014 = vsel %vm950, %v796, %v982
        %v1015 = vsel %vm951, %v801, %v983
        %v1016 = vsel %vm952, %v806, %v984
        %v1017 = vsel %vm953, %v811, %v985
        %v1018 = vsel %vm954, %v816, %v986
        %v1019 = vsel %vm955, %v821, %v987
        %v1020 = vsel %vm956, %v826, %v988
        %v1021 = vsel %vm957, %v831, %v989
        %v1022 = vsel %vm958, %v836, %v990
        %v1023 = vsel %vm959, %v841, %v991
        %v1024 = vsel %vm960, %v846, %v992
        %v1025 = vsel %vm961, %v851, %v993
        %v1026 = vsel %vm962, %v856, %v994
        %v1027 = vsel %vm963, %v861, %v995
        %v1028 = vsel %vm964, %v866, %v996
        %v1029 = vsel %vm965, %v871, %v997
        %v1030 = vsel %vm966, %v876, %v998
        %v1031 = vsel %vm967, %v881, %v999
        %v1032 = vsel %vm968, %v886, %v1000
        %v1033 = vsel %vm969, %v891, %v1001
        %v1034 = vsel %vm970, %v896, %v1002
        %v1035 = vsel %vm971, %v901, %v1003
        %v1036 = vsel %vm972, %v906, %v1004
        %v1037 = vsel %vm973, %v911, %v1005
        %v1038 = vsel %vm974, %v916, %v1006
        %v1039 = vsel %vm975, %v921, %v1007
        %v1040 = vsel %vm976, %v926, %v1008
        %v1041 = vsel %vm977, %v931, %v1009
        %v1042 = vsel %vm978, %v936, %v1010
        %v1043 = vsel %vm979, %v941, %v1011
        %v1044 = vsel %vm980, %v946, %v1012
        %1045 = vst [vmem:[%s177] sm:$0xff] %v1013
        %1046 = vst [vmem:[%s177 + $0x8] sm:$0xff] %v1014
        %1047 = vst [vmem:[%s177 + $0x10] sm:$0xff] %v1015
        %1048 = vst [vmem:[%s177 + $0x18] sm:$0xff] %v1016
        %1049 = vst [vmem:[%s177 + $0x20] sm:$0xff] %v1017
        %1050 = vst [vmem:[%s177 + $0x28] sm:$0xff] %v1018
        %1051 = vst [vmem:[%s177 + $0x30] sm:$0xff] %v1019
        %1052 = vst [vmem:[%s177 + $0x38] sm:$0xff] %v1020
        %1053 = vst [vmem:[%s177 + $0x40] sm:$0xff] %v1021
        %1054 = vst [vmem:[%s177 + $0x48] sm:$0xff] %v1022
        %1055 = vst [vmem:[%s177 + $0x50] sm:$0xff] %v1023
        %1056 = vst [vmem:[%s177 + $0x58] sm:$0xff] %v1024
        %1057 = vst [vmem:[%s177 + $0x60] sm:$0xff] %v1025
        %1058 = vst [vmem:[%s177 + $0x68] sm:$0xff] %v1026
        %1059 = vst [vmem:[%s177 + $0x70] sm:$0xff] %v1027
        %1060 = vst [vmem:[%s177 + $0x78] sm:$0xff] %v1028
        %1061 = vst [vmem:[%s177 + $0x80] sm:$0xff] %v1029
        %1062 = vst [vmem:[%s177 + $0x88] sm:$0xff] %v1030
        %1063 = vst [vmem:[%s177 + $0x90] sm:$0xff] %v1031
        %1064 = vst [vmem:[%s177 + $0x98] sm:$0xff] %v1032
        %1065 = vst [vmem:[%s177 + $0xa0] sm:$0xff] %v1033
        %1066 = vst [vmem:[%s177 + $0xa8] sm:$0xff] %v1034
        %1067 = vst [vmem:[%s177 + $0xb0] sm:$0xff] %v1035
        %1068 = vst [vmem:[%s177 + $0xb8] sm:$0xff] %v1036
        %1069 = vst [vmem:[%s177 + $0xc0] sm:$0xff] %v1037
        %1070 = vst [vmem:[%s177 + $0xc8] sm:$0xff] %v1038
        %1071 = vst [vmem:[%s177 + $0xd0] sm:$0xff] %v1039
        %1072 = vst [vmem:[%s177 + $0xd8] sm:$0xff] %v1040
        %1073 = vst [vmem:[%s177 + $0xe0] sm:$0xff] %v1041
        %1074 = vst [vmem:[%s177 + $0xe8] sm:$0xff] %v1042
        %1075 = vst [vmem:[%s177 + $0xf0] sm:$0xff] %v1043
        %1076 = vst [vmem:[%s177 + $0xf8] sm:$0xff] %v1044
        %s1077 = sand.u32 %s107, 1
        %s1078 = scalar_lea.sflag [#allocation3], %s1077
        %s1079 = sand.u32 %s107, 1
        %s1080 = smul.addr %s1079, 256
        %s1081 = scalar_lea.vmem [#allocation2], %s1080
        // Predicated region
        $region33: #{tpu_custom_call.1} parent=31 // pred_check
          %p1082 = pneg %p117
        $region34: #{tpu_custom_call.1} parent=31 // pred_check_branch
          %1084 = sbr.rel (%p1082) target = $region36
        $region35: #{tpu_custom_call.1} parent=31 // pred_region
          %s1085 = smul.u32 32, %s22
          %s1087 = ssub.s32 4096, 4096
          %1088 = vsyncadd %s1078, %s1087
          %s1089 = smul.addr %s21, 32
          %s1090 = sadd.s32 %s1085, %s1089
          %s1091 = smul.addr %s1090, 128
          %s1092 = scalar_lea.hbm %s3, %s1091
          %s1093 = sshll.u32 %s1081, 4
          %s1094 = int_to_ptr.vmem [resolvable:$true] %s1093
          %1099 = dma.vmem_to_hbm [thread:$0]  %s1094, 4096, %s1092, %s1078, 128, 128, 8
        $region36: #{tpu_custom_call.1} parent=31 // pred_fallthru
          _
      $region32: #{tpu_custom_call.1} parent=5 // pred_fallthru
        _
      %p1100 = scmp.le.s32.totalorder 2, %s12
      // Predicated region
      $region37: #{tpu_custom_call.1} parent=5 // pred_check
        %p1101 = pneg %p1100
      $region38: #{tpu_custom_call.1} parent=5 // pred_check_branch
        %1103 = sbr.rel (%p1101) target = $region40
      $region39: #{tpu_custom_call.1} parent=5 // pred_region
        %s1104 = ssub.s32 %s12, 2
        // Predicated region
        $region41: #{tpu_custom_call.1} parent=39 // pred_check
          %p1105 = pneg %p123
        $region42: #{tpu_custom_call.1} parent=39 // pred_check_branch
          %1107 = sbr.rel (%p1105) target = $region44
        $region43: #{tpu_custom_call.1} parent=39 // pred_region
          %s1108 = sand.u32 %s108, 1
          %s1109 = scalar_lea.sflag [#allocation3], %s1108
          %s1110 = sand.u32 %s108, 1
          %s1111 = smul.addr %s1110, 256
          %s1112 = scalar_lea.vmem [#allocation2], %s1111
          %1113 = dma.done %s1109, 4096
        $region44: #{tpu_custom_call.1} parent=39 // pred_fallthru
          _
      $region40: #{tpu_custom_call.1} parent=5 // pred_fallthru
        _
    $region6: #{tpu_custom_call.1} parent=1 // loop_footer
      %s16 = sadd.s32 1, %s12
    $region7: #{tpu_custom_call.1} parent=1 // loop_footer_branch
      %11 = sbr.rel target = $region3
    $region8: #{tpu_custom_call.1} parent=1 // loop_exit
      _
    %1114 = vsyncpa [#allocation3], 1
    %s1115 = scalar_lea.sflag [#allocation3], 1
    %1116 = vsyncpa %s1115, 1

</llo_original>
